<compile_context>
chip_gen: v5e
topology: v5e:2x2
jax: 0.10.0
libtpu: 0.0.40
codegen_flags: <defaults>
</compile_context>

<pallas_src>
import numpy as np
import jax
import jax.numpy as jnp
from jax import lax
from jax.experimental import pallas as pl
from jax.experimental.pallas import tpu as pltpu


def _round_up(x, m):
    return (x + m - 1) // m * m


def _affine_kernel(u_ref, w_ref, b_ref, o_ref):
    # One MXU matmul per row tile (bf16 inputs, f32 accumulation), bias fused in-kernel.
    o_ref[...] = (
        jnp.dot(u_ref[...], w_ref[...], preferred_element_type=jnp.float32)
        + b_ref[...]
    ).astype(o_ref.dtype)


def _choose_row_tile(M, L, Tp, vmem_budget=40 << 20):
    """Largest row tile (<=1024) whose pipeline footprint fits a conservative VMEM budget.

    No "prefer >=2 grid steps" halving: v5e/v6e have a single TensorCore, so extra grid
    steps are ~0.35 us/step of pure overhead.  Budget counts double-buffered streamed
    u (bf16) / out (f32) row tiles plus the (conservatively double-buffered) resident
    weight and bias; 40 MiB keeps headroom below v7x's 64 MiB physical VMEM.
    """
    per_row = 2 * (L * 2 + Tp * 4)               # double-buffered bf16 in + f32 out rows
    resident = 2 * (L * Tp * 2 + Tp * 4)         # weight (bf16) + bias (f32), worst case
    avail = max(vmem_budget - resident, per_row * 8)
    cap = max(8, min(1024, avail // per_row))
    align = 16 if M >= 16 else 8                 # 16 for bf16 sublane packing when rows allow
    cap = max(align, (cap // align) * align)
    need = _round_up(max(M, 1), align)
    return min(cap, need), per_row, resident


def affine_map_grid_forward(u, wt_lt, bias_row, L, T):
    """u: (batch, p*L) f32; wt_lt: (L, Tp) bf16 (pre-transposed, T zero-padded to a
    multiple of 128); bias_row: (1, Tp) f32 -> (batch, p*T) f32."""
    batch, pL = u.shape
    assert pL % L == 0, (pL, L)
    p = pL // L
    M = batch * p
    Tp = wt_lt.shape[1]

    # Fold batch & channels into rows (free reshape); bf16 feed for the MXU.
    u2 = u.reshape(M, L).astype(jnp.bfloat16)

    tm, per_row, resident = _choose_row_tile(M, L, Tp)
    grid = (pl.cdiv(M, tm),)

    vmem_est = resident + per_row * tm + (1 << 20)
    vmem_limit = int(min(max(vmem_est, 32 << 20), 56 << 20))

    # TODO(synk): for very large L*Tp (weight no longer resident in VMEM, hit first on
    # v7x's 64 MiB) add a K/T-tiled path: grid=(rows, K) with a VMEM (tm, Tp) f32
    # accumulator, pl.when(k==0) init / pl.when(k==last) writeback, K axis last and
    # "arbitrary"; and single-buffer the invariant weight via pipeline_mode=pl.Buffered(1).
    out = pl.pallas_call(
        _affine_kernel,
        out_shape=jax.ShapeDtypeStruct((M, Tp), jnp.float32),
        grid_spec=pltpu.PrefetchScalarGridSpec(
            num_scalar_prefetch=0,
            grid=grid,
            in_specs=[
                pl.BlockSpec((tm, L), lambda i: (i, 0)),   # streamed row tile (ragged edge masked)
                pl.BlockSpec((L, Tp), lambda i: (0, 0)),   # resident transposed, lane-padded weight
                pl.BlockSpec((1, Tp), lambda i: (0, 0)),   # resident bias row
            ],
            out_specs=pl.BlockSpec((tm, Tp), lambda i: (i, 0)),
        ),
        compiler_params=pltpu.CompilerParams(
            # TODO(synk): on v7x, pltpu.CORE_PARALLEL on this axis (with an even number of
            # >=512-row tiles) would shard the row axis across the 2 TensorCores.
            dimension_semantics=("parallel",),
            vmem_limit_bytes=vmem_limit,
        ),
        cost_estimate=pl.CostEstimate(
            flops=2 * M * L * Tp,
            transcendentals=0,
            bytes_accessed=M * L * 2 + L * Tp * 2 + Tp * 4 + M * Tp * 4,
        ),
    )(u2, wt_lt, bias_row)

    if Tp != T:
        out = out[:, :T]
    return out.reshape(batch, p * T)


class AffineMapGrid:
    """JAX/Pallas port of the PyTorch AffineMapGrid module (v(x) = A u(x) + b)."""

    def __init__(self, L, T, *, key):
        self.L, self.T = L, T
        kw, kb = jax.random.split(key)
        bound = 1.0 / float(np.sqrt(L))                  # nn.Linear default init range
        self.weight = jax.random.uniform(kw, (T, L), jnp.float32, -bound, bound)
        self.bias = jax.random.uniform(kb, (T,), jnp.float32, -bound, bound)

        # Prep kernel operands ONCE at init (free per forward call): transpose to (L, T),
        # zero-pad T to a lane-dense multiple of 128, cast the MXU operand to bf16.
        Tp = _round_up(T, 128)
        wt = jnp.zeros((L, Tp), jnp.float32).at[:, :T].set(self.weight.T)
        bp = jnp.zeros((1, Tp), jnp.float32).at[:, :T].set(self.bias.reshape(1, T))
        self.wt_lt = wt.astype(jnp.bfloat16)
        self.bias_row = bp

    def __call__(self, u):
        return affine_map_grid_forward(u, self.wt_lt, self.bias_row, self.L, self.T)


def reference_forward(module, u):
    """Pure-JAX mirror of the PyTorch forward for validation."""
    batch, pL = u.shape
    L, T = module.L, module.T
    p = pL // L
    x = u.reshape(batch, p, L)                    # the torch transposes/permutes cancel
    y = jnp.einsum("bpl,tl->bpt", x, module.weight,
                   precision=lax.Precision.HIGHEST) + module.bias
    return y.reshape(batch, p * T)


if __name__ == "__main__":
    batch, p, L, T = 2, 4, 16, 16                 # small shapes consistent with the module

    key = jax.random.PRNGKey(0)
    k_u, k_params = jax.random.split(key)

    module = AffineMapGrid(L, T, key=k_params)
    u = jax.random.normal(k_u, (batch, p * L), dtype=jnp.float32)

    out = module(u)
    out = jax.block_until_ready(out)
    assert out.shape == (batch, p * T), out.shape

    ref = reference_forward(module, u)
    err = float(jnp.max(jnp.abs(out - ref)) / (jnp.max(jnp.abs(ref)) + 1e-8))
    if not np.isfinite(err) or err > 2e-2:
        raise AssertionError(f"Pallas output mismatch vs JAX reference: rel err {err:.3e}")
    print("KERNEL_OK")
</pallas_src>

<mosaic_0001>
module attributes {stable_mosaic.version = 11 : i64} {
  func.func @_affine_kernel(%arg0: i32, %arg1: memref<8x16xbf16, #tpu.memory_space<vmem>>, %arg2: memref<16x128xbf16, #tpu.memory_space<vmem>>, %arg3: memref<1x128xf32, #tpu.memory_space<vmem>>, %arg4: memref<8x128xf32, #tpu.memory_space<vmem>>) attributes {dimension_semantics = [#tpu.dimension_semantics<parallel>], iteration_bounds = array<i64: 1>, scalar_prefetch = 0 : i64, scratch_operands = 0 : i64, tpu.core_type = #tpu.core_type<tc>, window_params = [{transform_indices = @transform_0, window_bounds = array<i64: 8, 16>}, {pipeline_mode = #tpu.pipeline_mode<synchronous>, transform_indices = @transform_1, window_bounds = array<i64: 16, 128>}, {pipeline_mode = #tpu.pipeline_mode<synchronous>, transform_indices = @transform_2, window_bounds = array<i64: 1, 128>}, {transform_indices = @transform_3, window_bounds = array<i64: 8, 128>}]} {
    %c0 = arith.constant 0 : index
    %c0_0 = arith.constant 0 : index
    %0 = vector.load %arg1[%c0, %c0_0] : memref<8x16xbf16, #tpu.memory_space<vmem>>, vector<8x16xbf16>
    %c0_1 = arith.constant 0 : index
    %c0_2 = arith.constant 0 : index
    %1 = vector.load %arg2[%c0_1, %c0_2] : memref<16x128xbf16, #tpu.memory_space<vmem>>, vector<16x128xbf16>
    %cst = arith.constant dense<0.000000e+00> : vector<8x128xf32>
    %2 = tpu.matmul %0, %1, %cst {dimension_numbers = #tpu.dot_dimension_numbers<[1], [0], [0], [1], [0, 0, 1, 1], [], []>} : vector<8x16xbf16>, vector<16x128xbf16>, vector<8x128xf32> -> vector<8x128xf32>
    %c0_3 = arith.constant 0 : index
    %c0_4 = arith.constant 0 : index
    %3 = vector.load %arg3[%c0_3, %c0_4] : memref<1x128xf32, #tpu.memory_space<vmem>>, vector<1x128xf32>
    %4 = vector.broadcast %3 : vector<1x128xf32> to vector<8x128xf32>
    %5 = arith.addf %2, %4 : vector<8x128xf32>
    %c0_5 = arith.constant 0 : index
    %c0_6 = arith.constant 0 : index
    %6 = vector.load %arg4[%c0_5, %c0_6] : memref<8x128xf32, #tpu.memory_space<vmem>>, vector<8x128xf32>
    tpu.vector_store %arg4[%c0_5, %c0_6], %5 {strides = array<i32>} : memref<8x128xf32, #tpu.memory_space<vmem>>, vector<8x128xf32>,
    return
  }
  func.func @transform_0(%arg0: i32) -> (i32, i32) {
    %c0_i32 = arith.constant 0 : i32
    %c0_i32_0 = arith.constant 0 : i32
    return %arg0, %c0_i32 : i32, i32
  }
  func.func @transform_1(%arg0: i32) -> (i32, i32) {
    %c0_i32 = arith.constant 0 : i32
    %c0_i32_0 = arith.constant 0 : i32
    %c0_i32_1 = arith.constant 0 : i32
    return %c0_i32, %c0_i32_0 : i32, i32
  }
  func.func @transform_2(%arg0: i32) -> (i32, i32) {
    %c0_i32 = arith.constant 0 : i32
    %c0_i32_0 = arith.constant 0 : i32
    %c0_i32_1 = arith.constant 0 : i32
    return %c0_i32, %c0_i32_0 : i32, i32
  }
  func.func @transform_3(%arg0: i32) -> (i32, i32) {
    %c0_i32 = arith.constant 0 : i32
    %c0_i32_0 = arith.constant 0 : i32
    return %arg0, %c0_i32 : i32, i32
  }
}

</mosaic_0001>

<llo_original>
// kernel: tpu_custom_call.1
$region0: #{tpu_custom_call.1}
  #allocation0 [shape = 'u32[]', space=smem, size = 0x4, offset = 0x4, fixed_abs, tag = 'smem constant byte address 0x4 - core index']
  #allocation1 [shape = 'u32[72,128]{1,0:T(1,128)}', space=vmem, size = 0x9000, scoped, tag = 'internal scratch']
  %s0 = inlined_call_operand.hbm [shape: bf16[8,16], index: 0, kind: input, shape index: {}]
  %s1 = inlined_call_operand.hbm [shape: bf16[16,128], index: 1, kind: input, shape index: {}]
  %s2 = inlined_call_operand.vmem [shape: f32[1,128], index: 2, kind: input, shape index: {}]
  %s3 = inlined_call_operand.hbm [shape: f32[8,128], index: 3, kind: output, shape index: {}]
  %s4 = sld [smem:[#allocation0]]
  $region30: #{tpu_custom_call.1} parent=0
    _
  %s6 = ssub.s32 1, %s4
  %s7 = scalar_select 0, %s6, %s4
  $region1: #{tpu_custom_call.1} parent=0
    #allocation2 [shape = 'u8[2048]{0}', space=vmem, size = 0x800, scoped, tag = 'input window, operand 0, single buffered']
    #allocation3 [shape = 's32[1]{0}', space=sflag, size = 0x4, scoped, tag = 'scoped memory for tpu_custom_call.1']
    #allocation4 [shape = 's32[1]{0}', space=sflag, size = 0x4, scoped, tag = 'scoped memory for tpu_custom_call.1']
    #allocation5 [shape = 'u8[4096]{0}', space=vmem, size = 0x1000, scoped, tag = 'input window, operand 1, single buffered']
    #allocation6 [shape = 's32[1]{0}', space=sflag, size = 0x4, scoped, tag = 'scoped memory for tpu_custom_call.1']
    #allocation7 [shape = 'u8[4096]{0}', space=vmem, size = 0x1000, scoped, tag = 'output window, operand 0, single buffered']
    %8 = vsyncpa [#allocation3], 0
    %9 = vsyncpa [#allocation6], 0
    %10 = vsyncpa [#allocation4], 0
    // Predicated region
    $region2: #{tpu_custom_call.1} parent=1 // pred_check
      _
    $region3: #{tpu_custom_call.1} parent=1 // pred_check_branch
      %12 = sbr.rel (0) target = $region5
    $region4: #{tpu_custom_call.1} parent=1 // pred_region
      %14 = vsyncadd [#allocation3], 0
      %s16 = sshll.u32 %s0, 4
      %s17 = int_to_ptr.hbm [resolvable:$true] %s16
      %s18 = sshll.u32 [#allocation2], 4
      %s19 = int_to_ptr.vmem [resolvable:$true] %s18
      %21 = dma.hbm_to_vmem [thread:$0]  %s17, 64, %s19, [#allocation3]
    $region5: #{tpu_custom_call.1} parent=1 // pred_fallthru
      _
    // Predicated region
    $region6: #{tpu_custom_call.1} parent=1 // pred_check
      _
    $region7: #{tpu_custom_call.1} parent=1 // pred_check_branch
      %23 = sbr.rel (0) target = $region9
    $region8: #{tpu_custom_call.1} parent=1 // pred_region
      %25 = vsyncadd [#allocation6], 0
      %s26 = sshll.u32 %s1, 4
      %s27 = int_to_ptr.hbm [resolvable:$true] %s26
      %s28 = sshll.u32 [#allocation5], 4
      %s29 = int_to_ptr.vmem [resolvable:$true] %s28
      %34 = dma.hbm_to_vmem [thread:$0]  %s27, 128, %s29, [#allocation6], 64, 64, 4
    $region9: #{tpu_custom_call.1} parent=1 // pred_fallthru
      _
    // Predicated region
    $region10: #{tpu_custom_call.1} parent=1 // pred_check
      _
    $region11: #{tpu_custom_call.1} parent=1 // pred_check_branch
      %36 = sbr.rel (0) target = $region13
    $region12: #{tpu_custom_call.1} parent=1 // pred_region
      _
    $region13: #{tpu_custom_call.1} parent=1 // pred_fallthru
      _
    // Predicated region
    $region14: #{tpu_custom_call.1} parent=1 // pred_check
      _
    $region15: #{tpu_custom_call.1} parent=1 // pred_check_branch
      %38 = sbr.rel (0) target = $region17
    $region16: #{tpu_custom_call.1} parent=1 // pred_region
      %40 = dma.done [#allocation3], 64
    $region17: #{tpu_custom_call.1} parent=1 // pred_fallthru
      _
    // Predicated region
    $region18: #{tpu_custom_call.1} parent=1 // pred_check
      _
    $region19: #{tpu_custom_call.1} parent=1 // pred_check_branch
      %42 = sbr.rel (0) target = $region21
    $region20: #{tpu_custom_call.1} parent=1 // pred_region
      %44 = dma.done [#allocation6], 128
    $region21: #{tpu_custom_call.1} parent=1 // pred_fallthru
      _
    %v46 = vld [vmem:[#allocation2] sm:$0xf]
    %v47 = vld [vmem:[#allocation5] sm:$0xf]
    %v48 = vld [vmem:[#allocation5 + $0x4] sm:$0xf]
    %v49 = vld [vmem:[%s2] sm:$0x1]
    %v51 = vperm.slane %v49, 0
    %v55 = vunpack.c.l.b16 %v47
    %v56 = vunpack.c.l.b16 %v48
    %v57 = vpack.c.b16 %v56, %v55
    %vm59 = vcmask 130048
    %v61 = vsel %vm59, %v46, 0
    %63 = vmatpush.bf16.msra.mxu0 0
    %64 = vmatpush.bf16.msra.mxu0 0
    %65 = vmatpush.bf16.msra.mxu0 0
    %66 = vmatpush.bf16.msra.mxu0 0
    %67 = vmatpush.bf16.msra.mxu0 0
    %68 = vmatpush.bf16.msra.mxu0 0
    %69 = vmatpush.bf16.msra.mxu0 0
    %70 = vmatpush.bf16.msra.mxu0 %v57
    %71 = vmatmul.bf16.gmra.mxu0 %v61
    %v72 = vpop.f32.mrf.mxu0
    %v73 = vadd.f32 %v51, %v72
    %v74 = vpop.f32.mrf.mxu0
    %75 = vdwg.mxu0
    %76 = vst [vmem:[#allocation7] sm:$0xff] %v73
    // Predicated region
    $region22: #{tpu_custom_call.1} parent=1 // pred_check
      _
    $region23: #{tpu_custom_call.1} parent=1 // pred_check_branch
      %78 = sbr.rel (0) target = $region25
    $region24: #{tpu_custom_call.1} parent=1 // pred_region
      %80 = vsyncadd [#allocation4], 0
      %s82 = sshll.u32 [#allocation7], 4
      %s83 = int_to_ptr.vmem [resolvable:$true] %s82
      %s84 = sshll.u32 %s3, 4
      %s85 = int_to_ptr.hbm [resolvable:$true] %s84
      %87 = dma.vmem_to_hbm [thread:$0]  %s83, 128, %s85, [#allocation4]
    $region25: #{tpu_custom_call.1} parent=1 // pred_fallthru
      _
    // Predicated region
    $region26: #{tpu_custom_call.1} parent=1 // pred_check
      _
    $region27: #{tpu_custom_call.1} parent=1 // pred_check_branch
      %89 = sbr.rel (0) target = $region29
    $region28: #{tpu_custom_call.1} parent=1 // pred_region
      %91 = dma.done [#allocation4], 128
    $region29: #{tpu_custom_call.1} parent=1 // pred_fallthru
      _
    %92 = vsyncpa [#allocation3], 1
    %93 = vsyncpa [#allocation6], 1
    %94 = vsyncpa [#allocation4], 1

</llo_original>
